<compile_context>
chip_gen: v7x
topology: tpu7x:2x2x1
jax: 0.10.0
libtpu: 0.0.40
codegen_flags: <defaults>
</compile_context>

<pallas_src>
import functools

import jax
import jax.numpy as jnp
from jax.experimental import pallas as pl
from jax.experimental.pallas import tpu as pltpu


def _silu(v):
    return v * jax.nn.sigmoid(v)


def _round_up(a, m):
    return (a + m - 1) // m * m


# --------------------------------------------------------------------------- #
# Kernel
# --------------------------------------------------------------------------- #
def _layer_kernel(x_ref, w_ref, b_ref, a_ref, s_ref, o_ref, *, c_out):
    # x_ref: (TILE_S, C_in)   f32  (cast to bf16 in-VMEM for the MXU)
    # w_ref: (C_in, C_out)    bf16 (resident; constant index_map)
    # b_ref: (1, C_out)       f32  linear bias
    # a_ref: (1, C_out)       f32  gamma * (1 + scale)          (per batch)
    # s_ref: (1, C_out)       f32  beta * (1 + scale) + shift   (per batch)
    # o_ref: (TILE_S, C_out)  out dtype

    # --- nn.Linear: bf16 MXU matmul, f32 accumulation -------------------------
    x = x_ref[...].astype(jnp.bfloat16)
    h = jnp.dot(x, w_ref[...], preferred_element_type=jnp.float32)
    h = h + b_ref[...]

    # --- LayerNorm over channels (eps=1e-5), single-pass statistics -----------
    inv_n = 1.0 / c_out
    mean = jnp.sum(h, axis=-1, keepdims=True) * inv_n
    ex2 = jnp.sum(h * h, axis=-1, keepdims=True) * inv_n
    var = jnp.maximum(ex2 - mean * mean, 0.0)          # clamp rounding error
    ln = (h - mean) * jax.lax.rsqrt(var + 1e-5)

    # --- fused (LayerNorm affine + AdaLN modulation) + silu --------------------
    y = ln * a_ref[...] + s_ref[...]
    # TODO(synk): training-mode dropout (p=0.1) omitted; inference dropout is identity.
    o_ref[...] = _silu(y).astype(o_ref.dtype)


# --------------------------------------------------------------------------- #
# Tiling helpers
# --------------------------------------------------------------------------- #
def _vmem_capacity_bytes():
    try:
        return int(pltpu.get_tpu_info().vmem_capacity_bytes)
    except Exception:
        return 64 * 1024 * 1024  # conservative (v7x-sized) fallback


def _choose_tile_s(S, B, C_in, C_out, x_bytes, o_bytes, vmem_budget):
    """Largest sublane-aligned seq tile whose working set fits the VMEM budget."""
    per_row = (2 * C_in * x_bytes      # double-buffered x tile
               + 2 * C_out * o_bytes   # double-buffered out tile
               + 3 * C_out * 4)        # h / ln / y f32 intermediates (+spill slack)
    fixed = C_in * C_out * 2 + 8 * C_out * 4   # resident bf16 W + per-batch vectors
    rows = max(8, (vmem_budget - fixed) // max(per_row, 1))
    tile = min(1024, (int(rows) // 8) * 8, _round_up(S, 8))
    tile = max(tile, 8)
    # v7x megacore: try to expose >= 2 parallel grid blocks for the two TCs.
    while B * (-(-S // tile)) < 2 and tile > 8:
        tile = max(8, _round_up(tile // 2, 8))
    return tile


# --------------------------------------------------------------------------- #
# Wrapper
# --------------------------------------------------------------------------- #
def layer_forward(x, conditioning, params, *, tile_s=None, out_dtype=None):
    """x: (B, S, C_in), conditioning: (B, cond_dim) -> (B, S, C_out).

    out_dtype defaults to x.dtype (module parity); pass jnp.bfloat16 if the
    consumer accepts it to halve the output HBM writeback.
    """
    B, S, C_in = x.shape
    C_out = params["w_lin"].shape[-1]
    out_dtype = x.dtype if out_dtype is None else out_dtype

    # ---- hoisted conditioning path (single full-width matmul for all B) -----
    cond_f32 = conditioning.astype(jnp.float32)
    emb = _silu(cond_f32) @ params["w_cond"].astype(jnp.float32)
    emb = emb + params["b_cond"].reshape(1, -1).astype(jnp.float32)
    scale = emb[:, :C_out]                       # diffusers order: scale first
    shift = emb[:, C_out:]
    gamma = params["gamma"].reshape(1, -1).astype(jnp.float32)
    beta = params["beta"].reshape(1, -1).astype(jnp.float32)
    a_fused = (gamma * (1.0 + scale)).reshape(B, 1, C_out)        # (B,1,C_out)
    s_fused = (beta * (1.0 + scale) + shift).reshape(B, 1, C_out)  # (B,1,C_out)

    w = params["w_lin"].astype(jnp.bfloat16)                      # tiny; resident
    b = params["b_lin"].reshape(1, -1).astype(jnp.float32)

    # ---- VMEM-aware tile sizing ----------------------------------------------
    vmem_cap = _vmem_capacity_bytes()
    vmem_limit = min(int(vmem_cap * 0.7), 100 * 1024 * 1024)
    budget = int(vmem_limit * 0.8)
    x_bytes = jnp.dtype(x.dtype).itemsize
    o_bytes = jnp.dtype(out_dtype).itemsize
    if tile_s is None:
        TILE_S = _choose_tile_s(S, B, C_in, C_out, x_bytes, o_bytes, budget)
    else:
        TILE_S = max(8, min(_round_up(tile_s, 8), _round_up(S, 8)))

    grid = (B, pl.cdiv(S, TILE_S))

    # Deeper buffering on the cheap x tile where VMEM is roomy (v5e/v6e);
    # keep the default 2 on v7x (64 MiB physical).
    n_buf_x = 3 if vmem_cap > (64 << 20) else 2
    try:
        x_spec = pl.BlockSpec((None, TILE_S, C_in), lambda bi, mi: (bi, mi, 0),
                              pipeline_mode=pl.Buffered(n_buf_x))
    except TypeError:  # older jax without pipeline_mode
        x_spec = pl.BlockSpec((None, TILE_S, C_in), lambda bi, mi: (bi, mi, 0))

    kernel = functools.partial(_layer_kernel, c_out=C_out)

    out = pl.pallas_call(
        kernel,
        out_shape=jax.ShapeDtypeStruct((B, S, C_out), out_dtype),
        grid_spec=pltpu.PrefetchScalarGridSpec(
            num_scalar_prefetch=0,
            grid=grid,
            in_specs=[
                x_spec,                                                   # x tile
                pl.BlockSpec((C_in, C_out), lambda bi, mi: (0, 0)),       # W (resident)
                pl.BlockSpec((1, C_out), lambda bi, mi: (0, 0)),          # b_lin
                pl.BlockSpec((None, 1, C_out), lambda bi, mi: (bi, 0, 0)),  # fused scale
                pl.BlockSpec((None, 1, C_out), lambda bi, mi: (bi, 0, 0)),  # fused shift
            ],
            out_specs=pl.BlockSpec((None, TILE_S, C_out), lambda bi, mi: (bi, mi, 0)),
        ),
        compiler_params=pltpu.CompilerParams(
            dimension_semantics=("parallel", "parallel"),
            vmem_limit_bytes=vmem_limit,
        ),
    )(x, w, b, a_fused, s_fused)

    return out


# --------------------------------------------------------------------------- #
# Pure-JAX reference (PyTorch eval-mode semantics)
# --------------------------------------------------------------------------- #
def reference_forward(x, conditioning, params, matmul_dtype=jnp.float32):
    h = jnp.einsum(
        "bsi,io->bso",
        x.astype(matmul_dtype),
        params["w_lin"].astype(matmul_dtype),
        preferred_element_type=jnp.float32,
    ).astype(jnp.float32)
    h = h + params["b_lin"].reshape(1, 1, -1)
    c = _silu(conditioning.astype(jnp.float32))
    emb = c @ params["w_cond"].astype(jnp.float32) + params["b_cond"].reshape(1, -1)
    C_out = h.shape[-1]
    scale, shift = emb[:, :C_out], emb[:, C_out:]
    mean = jnp.mean(h, axis=-1, keepdims=True)
    var = jnp.mean((h - mean) ** 2, axis=-1, keepdims=True)
    ln = (h - mean) * jax.lax.rsqrt(var + 1e-5)
    ln = ln * params["gamma"].reshape(1, 1, -1) + params["beta"].reshape(1, 1, -1)
    y = ln * (1.0 + scale[:, None, :]) + shift[:, None, :]
    return _silu(y)


# --------------------------------------------------------------------------- #
# Self-test
# --------------------------------------------------------------------------- #
def _run_case(key, B, S, C_in, C_out, cond_dim):
    keys = jax.random.split(key, 8)
    x = jax.random.normal(keys[0], (B, S, C_in), dtype=jnp.float32)
    cond = jax.random.normal(keys[1], (B, cond_dim), dtype=jnp.float32)
    params = {
        "w_lin":  0.05 * jax.random.normal(keys[2], (C_in, C_out), jnp.float32),
        "b_lin":  0.01 * jax.random.normal(keys[3], (1, C_out), jnp.float32),
        "w_cond": 0.02 * jax.random.normal(keys[4], (cond_dim, 2 * C_out), jnp.float32),
        "b_cond": 0.01 * jax.random.normal(keys[5], (1, 2 * C_out), jnp.float32),
        "gamma":  jnp.ones((1, C_out), jnp.float32)
                  + 0.01 * jax.random.normal(keys[6], (1, C_out), jnp.float32),
        "beta":   0.01 * jax.random.normal(keys[7], (1, C_out), jnp.float32),
    }

    out = jax.block_until_ready(layer_forward(x, cond, params))
    assert out.shape == (B, S, C_out)

    # Tight check vs a reference using the same bf16 matmul operands.
    ref_bf16 = reference_forward(x, cond, params, matmul_dtype=jnp.bfloat16)
    assert jnp.allclose(out, ref_bf16, atol=2e-3, rtol=2e-3), \
        "mismatch vs bf16-matched reference"

    # Loose sanity check vs the full-f32 reference (bf16 MXU rounding).
    ref_f32 = reference_forward(x, cond, params, matmul_dtype=jnp.float32)
    assert jnp.allclose(out, ref_f32, atol=1e-1, rtol=1e-1), \
        "mismatch vs f32 reference"


if __name__ == "__main__":
    key = jax.random.PRNGKey(0)
    k0, k1 = jax.random.split(key)
    # Small shapes consistent with the module's forward (B, S, C_in) + (B, cond_dim).
    _run_case(k0, B=2, S=8, C_in=32, C_out=64, cond_dim=512)
    # Ragged sequence + single-batch case (exercises masked boundary tile and
    # the v7x >=2-grid-block split).
    _run_case(k1, B=1, S=13, C_in=32, C_out=64, cond_dim=512)
    print("KERNEL_OK")
</pallas_src>

<mosaic_0001>
module attributes {stable_mosaic.version = 11 : i64} {
  func.func @_layer_kernel(%arg0: i32, %arg1: i32, %arg2: memref<1x8x32xf32, #tpu.memory_space<vmem>>, %arg3: memref<32x64xbf16, #tpu.memory_space<vmem>>, %arg4: memref<1x64xf32, #tpu.memory_space<vmem>>, %arg5: memref<1x1x64xf32, #tpu.memory_space<vmem>>, %arg6: memref<1x1x64xf32, #tpu.memory_space<vmem>>, %arg7: memref<1x8x64xf32, #tpu.memory_space<vmem>>) attributes {dimension_semantics = [#tpu.dimension_semantics<parallel>, #tpu.dimension_semantics<parallel>], iteration_bounds = array<i64: 2, 1>, scalar_prefetch = 0 : i64, scratch_operands = 0 : i64, tpu.core_type = #tpu.core_type<tc>, window_params = [{pipeline_mode = #tpu.pipeline_mode<double_buffered>, transform_indices = @transform_0, window_bounds = array<i64: 1, 8, 32>}, {pipeline_mode = #tpu.pipeline_mode<synchronous>, transform_indices = @transform_1, window_bounds = array<i64: 32, 64>}, {pipeline_mode = #tpu.pipeline_mode<synchronous>, transform_indices = @transform_2, window_bounds = array<i64: 1, 64>}, {transform_indices = @transform_3, window_bounds = array<i64: 1, 1, 64>}, {transform_indices = @transform_4, window_bounds = array<i64: 1, 1, 64>}, {transform_indices = @transform_5, window_bounds = array<i64: 1, 8, 64>}]} {
    %c0 = arith.constant 0 : index
    %c0_0 = arith.constant 0 : index
    %c0_1 = arith.constant 0 : index
    %0 = vector.load %arg2[%c0, %c0_0, %c0_1] : memref<1x8x32xf32, #tpu.memory_space<vmem>>, vector<1x8x32xf32>
    %1 = vector.shape_cast %0 : vector<1x8x32xf32> to vector<8x32xf32>
    %2 = arith.truncf %1 : vector<8x32xf32> to vector<8x32xbf16>
    %c0_2 = arith.constant 0 : index
    %c0_3 = arith.constant 0 : index
    %3 = vector.load %arg3[%c0_2, %c0_3] : memref<32x64xbf16, #tpu.memory_space<vmem>>, vector<32x64xbf16>
    %cst = arith.constant dense<0.000000e+00> : vector<8x64xf32>
    %4 = tpu.matmul %2, %3, %cst {dimension_numbers = #tpu.dot_dimension_numbers<[1], [0], [0], [1], [0, 0, 1, 1], [], []>} : vector<8x32xbf16>, vector<32x64xbf16>, vector<8x64xf32> -> vector<8x64xf32>
    %c0_4 = arith.constant 0 : index
    %c0_5 = arith.constant 0 : index
    %5 = vector.load %arg4[%c0_4, %c0_5] : memref<1x64xf32, #tpu.memory_space<vmem>>, vector<1x64xf32>
    %6 = vector.broadcast %5 : vector<1x64xf32> to vector<8x64xf32>
    %7 = arith.addf %4, %6 : vector<8x64xf32>
    %cst_6 = arith.constant dense<0.000000e+00> : vector<8xf32>
    %8 = vector.multi_reduction <add>, %7, %cst_6 [1] : vector<8x64xf32> to vector<8xf32>
    %9 = vector.shape_cast %8 : vector<8xf32> to vector<8x1xf32>
    %cst_7 = arith.constant 1.562500e-02 : f32
    %10 = vector.broadcast %cst_7 : f32 to vector<8x1xf32>
    %11 = arith.mulf %9, %10 : vector<8x1xf32>
    %12 = arith.mulf %7, %7 : vector<8x64xf32>
    %cst_8 = arith.constant dense<0.000000e+00> : vector<8xf32>
    %13 = vector.multi_reduction <add>, %12, %cst_8 [1] : vector<8x64xf32> to vector<8xf32>
    %14 = vector.shape_cast %13 : vector<8xf32> to vector<8x1xf32>
    %cst_9 = arith.constant 1.562500e-02 : f32
    %15 = vector.broadcast %cst_9 : f32 to vector<8x1xf32>
    %16 = arith.mulf %14, %15 : vector<8x1xf32>
    %17 = arith.mulf %11, %11 : vector<8x1xf32>
    %18 = arith.subf %16, %17 : vector<8x1xf32>
    %cst_10 = arith.constant 0.000000e+00 : f32
    %19 = vector.broadcast %cst_10 : f32 to vector<8x1xf32>
    %20 = arith.maximumf %18, %19 : vector<8x1xf32>
    %21 = vector.broadcast %11 : vector<8x1xf32> to vector<8x64xf32>
    %22 = arith.subf %7, %21 : vector<8x64xf32>
    %cst_11 = arith.constant 9.99999974E-6 : f32
    %23 = vector.broadcast %cst_11 : f32 to vector<8x1xf32>
    %24 = arith.addf %20, %23 : vector<8x1xf32>
    %25 = math.rsqrt %24 : vector<8x1xf32>
    %26 = vector.broadcast %25 : vector<8x1xf32> to vector<8x64xf32>
    %27 = arith.mulf %22, %26 : vector<8x64xf32>
    %c0_12 = arith.constant 0 : index
    %c0_13 = arith.constant 0 : index
    %c0_14 = arith.constant 0 : index
    %28 = vector.load %arg5[%c0_12, %c0_13, %c0_14] : memref<1x1x64xf32, #tpu.memory_space<vmem>>, vector<1x1x64xf32>
    %29 = vector.shape_cast %28 : vector<1x1x64xf32> to vector<1x64xf32>
    %30 = vector.broadcast %29 : vector<1x64xf32> to vector<8x64xf32>
    %31 = arith.mulf %27, %30 : vector<8x64xf32>
    %c0_15 = arith.constant 0 : index
    %c0_16 = arith.constant 0 : index
    %c0_17 = arith.constant 0 : index
    %32 = vector.load %arg6[%c0_15, %c0_16, %c0_17] : memref<1x1x64xf32, #tpu.memory_space<vmem>>, vector<1x1x64xf32>
    %33 = vector.shape_cast %32 : vector<1x1x64xf32> to vector<1x64xf32>
    %34 = vector.broadcast %33 : vector<1x64xf32> to vector<8x64xf32>
    %35 = arith.addf %31, %34 : vector<8x64xf32>
    %36 = arith.negf %35 : vector<8x64xf32>
    %37 = math.exp %36 : vector<8x64xf32>
    %cst_18 = arith.constant 1.000000e+00 : f32
    %38 = vector.broadcast %cst_18 : f32 to vector<8x64xf32>
    %39 = arith.addf %38, %37 : vector<8x64xf32>
    %40 = arith.divf %38, %39 : vector<8x64xf32>
    %41 = arith.mulf %35, %40 : vector<8x64xf32>
    %c0_19 = arith.constant 0 : index
    %c0_20 = arith.constant 0 : index
    %c0_21 = arith.constant 0 : index
    %42 = vector.load %arg7[%c0_19, %c0_20, %c0_21] : memref<1x8x64xf32, #tpu.memory_space<vmem>>, vector<1x8x64xf32>
    %43 = vector.shape_cast %42 : vector<1x8x64xf32> to vector<8x64xf32>
    %44 = vector.shape_cast %41 : vector<8x64xf32> to vector<1x8x64xf32>
    tpu.vector_store %arg7[%c0_19, %c0_20, %c0_21], %44 {strides = array<i32>} : memref<1x8x64xf32, #tpu.memory_space<vmem>>, vector<1x8x64xf32>,
    return
  }
  func.func @transform_0(%arg0: i32, %arg1: i32) -> (i32, i32, i32) {
    %c0_i32 = arith.constant 0 : i32
    %c0_i32_0 = arith.constant 0 : i32
    return %arg0, %arg1, %c0_i32 : i32, i32, i32
  }
  func.func @transform_1(%arg0: i32, %arg1: i32) -> (i32, i32) {
    %c0_i32 = arith.constant 0 : i32
    %c0_i32_0 = arith.constant 0 : i32
    %c0_i32_1 = arith.constant 0 : i32
    return %c0_i32, %c0_i32_0 : i32, i32
  }
  func.func @transform_2(%arg0: i32, %arg1: i32) -> (i32, i32) {
    %c0_i32 = arith.constant 0 : i32
    %c0_i32_0 = arith.constant 0 : i32
    %c0_i32_1 = arith.constant 0 : i32
    return %c0_i32, %c0_i32_0 : i32, i32
  }
  func.func @transform_3(%arg0: i32, %arg1: i32) -> (i32, i32, i32) {
    %c0_i32 = arith.constant 0 : i32
    %c0_i32_0 = arith.constant 0 : i32
    %c0_i32_1 = arith.constant 0 : i32
    return %arg0, %c0_i32, %c0_i32_0 : i32, i32, i32
  }
  func.func @transform_4(%arg0: i32, %arg1: i32) -> (i32, i32, i32) {
    %c0_i32 = arith.constant 0 : i32
    %c0_i32_0 = arith.constant 0 : i32
    %c0_i32_1 = arith.constant 0 : i32
    return %arg0, %c0_i32, %c0_i32_0 : i32, i32, i32
  }
  func.func @transform_5(%arg0: i32, %arg1: i32) -> (i32, i32, i32) {
    %c0_i32 = arith.constant 0 : i32
    %c0_i32_0 = arith.constant 0 : i32
    return %arg0, %arg1, %c0_i32 : i32, i32, i32
  }
}

</mosaic_0001>

<llo_original>
// kernel: tpu_custom_call.1
$region0: #{tpu_custom_call.1}
  #allocation0 [shape = 'u32[]', space=smem, size = 0x4, offset = 0x4, fixed_abs, tag = 'smem constant byte address 0x4 - core index']
  #allocation1 [shape = 'u32[144,128]{1,0:T(1,128)}', space=vmem, size = 0x12000, scoped, tag = 'internal scratch']
  %s0 = inlined_call_operand.hbm [shape: f32[2,8,32], index: 0, kind: input, shape index: {}]
  %s1 = inlined_call_operand.hbm [shape: bf16[32,64], index: 1, kind: input, shape index: {}]
  %s2 = inlined_call_operand.vmem [shape: f32[1,64], index: 2, kind: input, shape index: {}]
  %s3 = inlined_call_operand.vmem [shape: f32[2,1,64], index: 3, kind: input, shape index: {}]
  %s4 = inlined_call_operand.vmem [shape: f32[2,1,64], index: 4, kind: input, shape index: {}]
  %s5 = inlined_call_operand.hbm [shape: f32[2,8,64], index: 5, kind: output, shape index: {}]
  %s6 = sld [smem:[#allocation0]]
  $region61: #{tpu_custom_call.1} parent=0
    _
  %s8 = ssub.s32 1, %s6
  %s9 = scalar_select 0, %s8, %s6
  $region1: #{tpu_custom_call.1} parent=0
    #allocation2 [shape = 'u8[8192]{0}', space=vmem, size = 0x2000, scoped, tag = 'input window, operand 0']
    #allocation3 [shape = 's32[2]{0}', space=sflag, size = 0x8, scoped, tag = 'scoped memory for tpu_custom_call.1']
    #allocation4 [shape = 's32[2]{0}', space=sflag, size = 0x8, scoped, tag = 'scoped memory for tpu_custom_call.1']
    #allocation5 [shape = 'u8[8192]{0}', space=vmem, size = 0x2000, scoped, tag = 'input window, operand 1, single buffered']
    #allocation6 [shape = 's32[1]{0}', space=sflag, size = 0x4, scoped, tag = 'scoped memory for tpu_custom_call.1']
    #allocation7 [shape = 'u8[8192]{0}', space=vmem, size = 0x2000, scoped, tag = 'output window, operand 0']
    %10 = vsyncpa [#allocation3], 0
    %s11 = scalar_lea.sflag [#allocation3], 1
    %12 = vsyncpa %s11, 0
    %13 = vsyncpa [#allocation6], 0
    %14 = vsyncpa [#allocation4], 0
    %s15 = scalar_lea.sflag [#allocation4], 1
    %16 = vsyncpa %s15, 0
    loop: start=0, step=1, limit=4
    $region2: #{tpu_custom_call.1} parent=1 // loop_pre_header
      _
    $region3: #{tpu_custom_call.1} parent=1 // loop_header
      %s18 = sphi 0, %s22
      %p19 = scmp.ge.s32.totalorder %s18, 4
      %s25 = sphi 0, %s37
      %s26 = sphi 0, %s33
      %s27 = sphi 0, %s25
      %s28 = sphi 0, %s26
      %s29 = sphi 0, %s27
      %s30 = sphi 0, %s28
      %s42 = sphi 0, %s44
      %s45 = sphi 0, %s42
      %s46 = sphi 0, %s45
      %s62 = sphi 0, %s46
      %s66 = sphi 0, %s66
      %s68 = sphi 0, %s66
      %s69 = sphi 0, %s68
      %s83 = sphi 0, %s69
      %s87 = sphi 0, %s87
      %s89 = sphi 0, %s87
      %s90 = sphi 0, %s89
      %s104 = sphi 0, %s90
      %s110 = sphi 0, %s112
      %s113 = sphi 0, %s110
      %s114 = sphi 0, %s113
      %s130 = sphi 0, %s114
      %s136 = sphi 0, %s138
      %s139 = sphi 0, %s136
      %s140 = sphi 0, %s139
      %s156 = sphi 0, %s140
      %s164 = sphi 0, %s166
      %s167 = sphi 0, %s164
      %s168 = sphi 0, %s167
      %s184 = sphi 0, %s168
    $region4: #{tpu_custom_call.1} parent=1 // loop_header_branch
      %21 = sbr.rel (%p19) target = $region8
    $region5: #{tpu_custom_call.1} parent=1 // loop_body
      %s23 = ssub.s32 %s18, 1
      %s24 = ssub.s32 %s18, 2
      %s31 = sadd.s32 1, %s26
      %p32 = scmp.ge.s32.totalorder %s31, 1
      %s33 = scalar_select %p32, 0, %s31
      %s34 = sadd.s32 1, %s25
      %s35 = scalar_select %p32, %s34, %s25
      %p36 = scmp.ge.s32.totalorder %s35, 2
      %s37 = scalar_select %p36, 0, %s35
      %s38 = ssub.s32 %s25, %s37
      %s39 = ssub.s32 %s26, %s33
      %s40 = sor.u32 %s38, %s39
      %p41 = scmp.eq.s32.totalorder %s40, 0
      %s43 = sadd.s32 %s42, 1
      %s44 = scalar_select %p41, %s42, %s43
      %p47 = pneg %p41
      %p48 = scmp.eq.s32.totalorder %s18, 1
      %p49 = por %p47, %p48
      %p50 = scmp.ne.s32.totalorder %s42, %s45
      %p51 = scmp.eq.s32.totalorder %s18, 0
      %p52 = por %p50, %p51
      %p53 = scmp.ne.s32.totalorder %s42, %s45
      %p54 = scmp.eq.s32.totalorder %s23, 1
      %p55 = por %p53, %p54
      %p56 = scmp.ne.s32.totalorder %s45, %s46
      %p57 = scmp.eq.s32.totalorder %s23, 0
      %p58 = por %p56, %p57
      %p59 = scmp.ne.s32.totalorder %s45, %s46
      %p60 = scmp.eq.s32.totalorder %s24, 1
      %p61 = por %p59, %p60
      %p63 = scmp.ne.s32.totalorder %s46, %s62
      %p64 = scmp.eq.s32.totalorder %s24, 0
      %p65 = por %p63, %p64
      %s67 = sadd.s32 %s66, 1
      %p70 = scmp.eq.s32.totalorder %s18, 1
      %p71 = scmp.ne.s32.totalorder %s66, %s68
      %p72 = scmp.eq.s32.totalorder %s18, 0
      %p73 = por %p71, %p72
      %p74 = scmp.ne.s32.totalorder %s66, %s68
      %p75 = scmp.eq.s32.totalorder %s23, 1
      %p76 = por %p74, %p75
      %p77 = scmp.ne.s32.totalorder %s68, %s69
      %p78 = scmp.eq.s32.totalorder %s23, 0
      %p79 = por %p77, %p78
      %p80 = scmp.ne.s32.totalorder %s68, %s69
      %p81 = scmp.eq.s32.totalorder %s24, 1
      %p82 = por %p80, %p81
      %p84 = scmp.ne.s32.totalorder %s69, %s83
      %p85 = scmp.eq.s32.totalorder %s24, 0
      %p86 = por %p84, %p85
      %s88 = sadd.s32 %s87, 1
      %p91 = scmp.eq.s32.totalorder %s18, 1
      %p92 = scmp.ne.s32.totalorder %s87, %s89
      %p93 = scmp.eq.s32.totalorder %s18, 0
      %p94 = por %p92, %p93
      %p95 = scmp.ne.s32.totalorder %s87, %s89
      %p96 = scmp.eq.s32.totalorder %s23, 1
      %p97 = por %p95, %p96
      %p98 = scmp.ne.s32.totalorder %s89, %s90
      %p99 = scmp.eq.s32.totalorder %s23, 0
      %p100 = por %p98, %p99
      %p101 = scmp.ne.s32.totalorder %s89, %s90
      %p102 = scmp.eq.s32.totalorder %s24, 1
      %p103 = por %p101, %p102
      %p105 = scmp.ne.s32.totalorder %s90, %s104
      %p106 = scmp.eq.s32.totalorder %s24, 0
      %p107 = por %p105, %p106
      %s108 = ssub.s32 %s25, %s37
      %p109 = scmp.eq.s32.totalorder %s108, 0
      %s111 = sadd.s32 %s110, 1
      %s112 = scalar_select %p109, %s110, %s111
      %p115 = pneg %p109
      %p116 = scmp.eq.s32.totalorder %s18, 1
      %p117 = por %p115, %p116
      %p118 = scmp.ne.s32.totalorder %s110, %s113
      %p119 = scmp.eq.s32.totalorder %s18, 0
      %p120 = por %p118, %p119
      %p121 = scmp.ne.s32.totalorder %s110, %s113
      %p122 = scmp.eq.s32.totalorder %s23, 1
      %p123 = por %p121, %p122
      %p124 = scmp.ne.s32.totalorder %s113, %s114
      %p125 = scmp.eq.s32.totalorder %s23, 0
      %p126 = por %p124, %p125
      %p127 = scmp.ne.s32.totalorder %s113, %s114
      %p128 = scmp.eq.s32.totalorder %s24, 1
      %p129 = por %p127, %p128
      %p131 = scmp.ne.s32.totalorder %s114, %s130
      %p132 = scmp.eq.s32.totalorder %s24, 0
      %p133 = por %p131, %p132
      %s134 = ssub.s32 %s25, %s37
      %p135 = scmp.eq.s32.totalorder %s134, 0
      %s137 = sadd.s32 %s136, 1
      %s138 = scalar_select %p135, %s136, %s137
      %p141 = pneg %p135
      %p142 = scmp.eq.s32.totalorder %s18, 1
      %p143 = por %p141, %p142
      %p144 = scmp.ne.s32.totalorder %s136, %s139
      %p145 = scmp.eq.s32.totalorder %s18, 0
      %p146 = por %p144, %p145
      %p147 = scmp.ne.s32.totalorder %s136, %s139
      %p148 = scmp.eq.s32.totalorder %s23, 1
      %p149 = por %p147, %p148
      %p150 = scmp.ne.s32.totalorder %s139, %s140
      %p151 = scmp.eq.s32.totalorder %s23, 0
      %p152 = por %p150, %p151
      %p153 = scmp.ne.s32.totalorder %s139, %s140
      %p154 = scmp.eq.s32.totalorder %s24, 1
      %p155 = por %p153, %p154
      %p157 = scmp.ne.s32.totalorder %s140, %s156
      %p158 = scmp.eq.s32.totalorder %s24, 0
      %p159 = por %p157, %p158
      %s160 = ssub.s32 %s25, %s37
      %s161 = ssub.s32 %s26, %s33
      %s162 = sor.u32 %s160, %s161
      %p163 = scmp.eq.s32.totalorder %s162, 0
      %s165 = sadd.s32 %s164, 1
      %s166 = scalar_select %p163, %s164, %s165
      %p169 = pneg %p163
      %p170 = scmp.eq.s32.totalorder %s18, 1
      %p171 = por %p169, %p170
      %p172 = scmp.ne.s32.totalorder %s164, %s167
      %p173 = scmp.eq.s32.totalorder %s18, 0
      %p174 = por %p172, %p173
      %p175 = scmp.ne.s32.totalorder %s164, %s167
      %p176 = scmp.eq.s32.totalorder %s23, 1
      %p177 = por %p175, %p176
      %p178 = scmp.ne.s32.totalorder %s167, %s168
      %p179 = scmp.eq.s32.totalorder %s23, 0
      %p180 = por %p178, %p179
      %p181 = scmp.ne.s32.totalorder %s167, %s168
      %p182 = scmp.eq.s32.totalorder %s24, 1
      %p183 = por %p181, %p182
      %p185 = scmp.ne.s32.totalorder %s168, %s184
      %p186 = scmp.eq.s32.totalorder %s24, 0
      %p187 = por %p185, %p186
      %p188 = scmp.le.s32.totalorder 1, %s18
      %p189 = scmp.lt.s32.totalorder %s18, 3
      %p190 = pnand %p188, %p189
      %p191 = pneg %p190
      // Predicated region
      $region9: #{tpu_custom_call.1} parent=5 // pred_check
        _
      $region10: #{tpu_custom_call.1} parent=5 // pred_check_branch
        %193 = sbr.rel (%p190) target = $region12
      $region11: #{tpu_custom_call.1} parent=5 // pred_region
        %s194 = ssub.s32 %s18, 1
        // Predicated region
        $region13: #{tpu_custom_call.1} parent=11 // pred_check
          %p195 = pneg %p79
        $region14: #{tpu_custom_call.1} parent=11 // pred_check_branch
          %197 = sbr.rel (%p195) target = $region16
        $region15: #{tpu_custom_call.1} parent=11 // pred_region
          %s199 = ssub.s32 256, 256
          %200 = vsyncadd [#allocation6], %s199
          %s201 = sshll.u32 [#allocation5], 4
          %s202 = int_to_ptr.vmem [resolvable:$true] %s201
          %207 = dma.hbm_to_vmem [thread:$0]  %s1, 256, %s202, [#allocation6], 64, 64, 4
        $region16: #{tpu_custom_call.1} parent=11 // pred_fallthru
          _
        // Predicated region
        $region17: #{tpu_custom_call.1} parent=11 // pred_check
          %p208 = pneg %p100
        $region18: #{tpu_custom_call.1} parent=11 // pred_check_branch
          %210 = sbr.rel (%p208) target = $region20
        $region19: #{tpu_custom_call.1} parent=11 // pred_region
          _
        $region20: #{tpu_custom_call.1} parent=11 // pred_fallthru
          _
      $region12: #{tpu_custom_call.1} parent=5 // pred_fallthru
        _
      %p211 = scmp.lt.s32.totalorder %s18, 2
      // Predicated region
      $region21: #{tpu_custom_call.1} parent=5 // pred_check
        %p212 = pneg %p211
      $region22: #{tpu_custom_call.1} parent=5 // pred_check_branch
        %214 = sbr.rel (%p212) target = $region24
      $region23: #{tpu_custom_call.1} parent=5 // pred_region
        // Predicated region
        $region25: #{tpu_custom_call.1} parent=23 // pred_check
          %p215 = pneg %p52
        $region26: #{tpu_custom_call.1} parent=23 // pred_check_branch
          %217 = sbr.rel (%p215) target = $region28
        $region27: #{tpu_custom_call.1} parent=23 // pred_region
          %s218 = sand.u32 %s42, 1
          %s219 = scalar_lea.sflag [#allocation3], %s218
          %s220 = sand.u32 %s42, 1
          %s221 = smul.addr %s220, 8
          %s222 = scalar_lea.vmem [#allocation2], %s221
          %s224 = ssub.s32 128, 128
          %225 = vsyncadd %s219, %s224
          %s226 = sadd.s32 %s26, %s25
          %s227 = smul.addr %s226, 128
          %s228 = scalar_lea.hbm %s0, %s227
          %s230 = sshll.u32 %s222, 4
          %s231 = int_to_ptr.vmem [resolvable:$true] %s230
          %233 = dma.hbm_to_vmem [thread:$0]  %s228, 128, %s231, %s219
        $region28: #{tpu_custom_call.1} parent=23 // pred_fallthru
          _
        // Predicated region
        $region29: #{tpu_custom_call.1} parent=23 // pred_check
          %p234 = pneg %p120
        $region30: #{tpu_custom_call.1} parent=23 // pred_check_branch
          %236 = sbr.rel (%p234) target = $region32
        $region31: #{tpu_custom_call.1} parent=23 // pred_region
          %p237 = scmp.lt.s32.totalorder %s25, 1
          %s238 = scalar_select %p237, %s25, 1
          %s239 = scalar_lea.vmem %s3, %s238
        $region32: #{tpu_custom_call.1} parent=23 // pred_fallthru
          _
        // Predicated region
        $region33: #{tpu_custom_call.1} parent=23 // pred_check
          %p240 = pneg %p146
        $region34: #{tpu_custom_call.1} parent=23 // pred_check_branch
          %242 = sbr.rel (%p240) target = $region36
        $region35: #{tpu_custom_call.1} parent=23 // pred_region
          %p243 = scmp.lt.s32.totalorder %s25, 1
          %s244 = scalar_select %p243, %s25, 1
          %s245 = scalar_lea.vmem %s4, %s244
        $region36: #{tpu_custom_call.1} parent=23 // pred_fallthru
          _
      $region24: #{tpu_custom_call.1} parent=5 // pred_fallthru
        _
      %p246 = scmp.le.s32.totalorder 1, %s18
      %p247 = scmp.lt.s32.totalorder %s18, 3
      %p248 = pnand %p246, %p247
      %p249 = pneg %p248
      // Predicated region
      $region37: #{tpu_custom_call.1} parent=5 // pred_check
        _
      $region38: #{tpu_custom_call.1} parent=5 // pred_check_branch
        %251 = sbr.rel (%p248) target = $region40
      $region39: #{tpu_custom_call.1} parent=5 // pred_region
        %s252 = ssub.s32 %s18, 1
        %s253 = sand.u32 %s45, 1
        %s254 = scalar_lea.sflag [#allocation3], %s253
        %s255 = sand.u32 %s45, 1
        %s256 = smul.addr %s255, 8
        %s257 = scalar_lea.vmem [#allocation2], %s256
        // Predicated region
        $region41: #{tpu_custom_call.1} parent=39 // pred_check
          %p258 = pneg %p58
        $region42: #{tpu_custom_call.1} parent=39 // pred_check_branch
          %260 = sbr.rel (%p258) target = $region44
        $region43: #{tpu_custom_call.1} parent=39 // pred_region
          %261 = dma.done %s254, 128
        $region44: #{tpu_custom_call.1} parent=39 // pred_fallthru
          _
        // Predicated region
        $region45: #{tpu_custom_call.1} parent=39 // pred_check
          %p262 = pneg %p79
        $region46: #{tpu_custom_call.1} parent=39 // pred_check_branch
          %264 = sbr.rel (%p262) target = $region48
        $region47: #{tpu_custom_call.1} parent=39 // pred_region
          %265 = dma.done [#allocation6], 256
        $region48: #{tpu_custom_call.1} parent=39 // pred_fallthru
          _
        %s266 = sand.u32 %s45, 1
        %s267 = scalar_lea.sflag [#allocation3], %s266
        %s268 = sand.u32 %s45, 1
        %s269 = smul.addr %s268, 8
        %s270 = scalar_lea.vmem [#allocation2], %s269
        %p271 = pneg %p58
        %p272 = pneg %p55
        %p273 = pneg %p79
        %p274 = pneg %p76
        %p275 = pneg %p100
        %p276 = pneg %p97
        %p277 = scmp.lt.s32.totalorder %s27, 1
        %s278 = scalar_select %p277, %s27, 1
        %s279 = scalar_lea.vmem %s3, %s278
        %p280 = pneg %p126
        %p281 = pneg %p123
        %p282 = scmp.lt.s32.totalorder %s27, 1
        %s283 = scalar_select %p282, %s27, 1
        %s284 = scalar_lea.vmem %s4, %s283
        %p285 = pneg %p152
        %p286 = pneg %p149
        %p287 = pneg %p180
        %p288 = pneg %p177
        %s289 = sand.u32 %s167, 1
        %s290 = scalar_lea.sflag [#allocation4], %s289
        %s291 = sand.u32 %s167, 1
        %s292 = smul.addr %s291, 8
        %s293 = scalar_lea.vmem [#allocation7], %s292
        %p294 = scmp.lt.s32.totalorder %s27, 1
        %s295 = scalar_select %p294, %s27, 1
        %s296 = scalar_lea.vmem %s3, %s295
        %p297 = scmp.lt.s32.totalorder %s27, 1
        %s298 = scalar_select %p297, %s27, 1
        %s299 = scalar_lea.vmem %s4, %s298
        %v301 = vld [vmem:[%s257] sm:$0xff]
        %v302 = vpack.c.bf16 %v301, %v301
        %v303 = vld [vmem:[#allocation5] sm:$0xf]
        %v304 = vld [vmem:[#allocation5 + $0x4] sm:$0xf]
        %v305 = vld [vmem:[#allocation5 + $0x8] sm:$0xf]
        %v306 = vld [vmem:[#allocation5 + $0xc] sm:$0xf]
        %v307 = vld [vmem:[%s2] sm:$0x1]
        %v309 = vlaneseq
        %v310 = vshrl.u32 %v309, 7
        %v311 = vsub.s32 0, %v310
        %v312 = vrot.slane %v307, %v311
        %v318 = vunpack.c.l.b16 %v303
        %v319 = vunpack.c.l.b16 %v304
        %v320 = vunpack.c.l.b16 %v305
        %v321 = vunpack.c.l.b16 %v306
        %v322 = vpack.c.b16 %v319, %v318
        %v323 = vpack.c.b16 %v321, %v320
        %vm326 = vcmask 261120
        %v328 = vsel %vm326, %v302, 0
        %330 = vmatprep.subr.bf16.mxu0 0
        %331 = vmatpush1.bf16.msra.mxu0 %v322
        %332 = vmatprep.subr.bf16.mxu0 0
        %333 = vmatpush1.bf16.msra.mxu0 %v323
        %334 = vmatprep.subr.bf16.mxu0 0
        %335 = vmatpush1.bf16.msra.mxu0 0
        %336 = vmatprep.subr.bf16.mxu0 0
        %337 = vmatpush1.bf16.msra.mxu0 0
        %338 = vmatprep.subr.bf16.mxu0 0
        %339 = vmatpush1.bf16.msra.mxu0 0
        %340 = vmatprep.subr.bf16.mxu0 0
        %341 = vmatpush1.bf16.msra.mxu0 0
        %342 = vmatprep.subr.bf16.mxu0 0
        %343 = vmatpush1.bf16.msra.mxu0 0
        %344 = vmatprep.subr.bf16.mxu0 0
        %345 = vmatpush1.bf16.msra.mxu0 0
        %346 = vmatprep.subr.bf16.mxu0 0
        %347 = vmatpush1.bf16.msra.mxu0 0
        %348 = vmatprep.subr.bf16.mxu0 0
        %349 = vmatpush1.bf16.msra.mxu0 0
        %350 = vmatprep.subr.bf16.mxu0 0
        %351 = vmatpush1.bf16.msra.mxu0 0
        %352 = vmatprep.subr.bf16.mxu0 0
        %353 = vmatpush1.bf16.msra.mxu0 0
        %354 = vmatprep.subr.bf16.mxu0 0
        %355 = vmatpush1.bf16.msra.mxu0 0
        %356 = vmatprep.subr.bf16.mxu0 0
        %357 = vmatpush1.bf16.msra.mxu0 0
        %358 = vmatprep.subr.bf16.mxu0 0
        %359 = vmatpush1.bf16.msra.mxu0 0
        %360 = vmatprep.subr.bf16.mxu0 0
        %361 = vmatpush1.bf16.msra.mxu0 0
        %362 = vmatprep.mubr.bf16.mxu0 0
        %363 = vmatmul.mubr.bf16.gmra.mrb[0].mxu0 %v328
        %v364 = vpop.f32.mrb[0].mxu0
        %v365 = vadd.f32 %v312, %v364
        %v366 = vpop.f32.mrb[0].mxu0
        %v367 = vpop.f32.mrb[0].mxu0
        %v368 = vpop.f32.mrb[0].mxu0
        %369 = vdwg.mxu0
        %vm370 = vcmask 523264
        %v371 = vsel %vm370, %v365, 0.0
        %372 = vadd.xlane.f32.xlu0 %v371
        %v373 = vpop.xlane.xlu0 %372
        %v374 = vmul.f32 %v373, 0.015625
        %v375 = vmul.f32 %v365, %v365
        %v376 = vsel %vm370, %v375, 0.0
        %377 = vadd.xlane.f32.xlu0 %v376
        %v378 = vpop.xlane.xlu0 %377
        %v379 = vmul.f32 %v378, 0.015625
        %v380 = vmul.f32 %v374, %v374
        %v381 = vsub.f32 %v379, %v380
        %v382 = vmax.f32 %v381, 0.0
        %v383 = vsub.f32 %v365, %v374
        %v384 = vadd.f32 %v382, 1e-05
        %v385 = vrsqrt.pop %v384
        %v386 = vmul.f32 %v383, %v385
        %v387 = vld [vmem:[%s296] sm:$0x1]
        %v389 = vlaneseq
        %v390 = vshrl.u32 %v389, 7
        %v391 = vsub.s32 0, %v390
        %v392 = vrot.slane %v387, %v391
        %v394 = vmul.f32 %v386, %v392
        %v395 = vld [vmem:[%s299] sm:$0x1]
        %v397 = vlaneseq
        %v398 = vshrl.u32 %v397, 7
        %v399 = vsub.s32 0, %v398
        %v400 = vrot.slane %v395, %v399
        %v402 = vadd.f32 %v394, %v400
        %v403 = vxor.u32 %v402, 2147483648
        %v404 = vmul.f32 %v403, 1.442695
        %v405 = vpow.pop %v404
        %v406 = vadd.f32 %v405, 1.0
        %v407 = vrcp.pop %v406
        %v408 = vmul.f32 1.0, %v407
        %v409 = vmul.f32 %v402, %v408
        %410 = vst.msk [vmem:[%s293] sm:$0xff] %vm370, %v409
        %s411 = sand.u32 %s167, 1
        %s412 = scalar_lea.sflag [#allocation4], %s411
        %s413 = sand.u32 %s167, 1
        %s414 = smul.addr %s413, 8
        %s415 = scalar_lea.vmem [#allocation7], %s414
        // Predicated region
        $region49: #{tpu_custom_call.1} parent=39 // pred_check
          %p416 = pneg %p177
        $region50: #{tpu_custom_call.1} parent=39 // pred_check_branch
          %418 = sbr.rel (%p416) target = $region52
        $region51: #{tpu_custom_call.1} parent=39 // pred_region
          %s420 = ssub.s32 128, 128
          %421 = vsyncadd %s412, %s420
          %s422 = sadd.s32 %s28, %s27
          %s423 = smul.addr %s422, 128
          %s424 = scalar_lea.hbm %s5, %s423
          %s426 = sshll.u32 %s415, 4
          %s427 = int_to_ptr.vmem [resolvable:$true] %s426
          %429 = dma.vmem_to_hbm [thread:$0]  %s427, 128, %s424, %s412
        $region52: #{tpu_custom_call.1} parent=39 // pred_fallthru
          _
      $region40: #{tpu_custom_call.1} parent=5 // pred_fallthru
        _
      %p430 = scmp.le.s32.totalorder 2, %s18
      // Predicated region
      $region53: #{tpu_custom_call.1} parent=5 // pred_check
        %p431 = pneg %p430
      $region54: #{tpu_custom_call.1} parent=5 // pred_check_branch
        %433 = sbr.rel (%p431) target = $region56
      $region55: #{tpu_custom_call.1} parent=5 // pred_region
        %s434 = ssub.s32 %s18, 2
        // Predicated region
        $region57: #{tpu_custom_call.1} parent=55 // pred_check
          %p435 = pneg %p183
        $region58: #{tpu_custom_call.1} parent=55 // pred_check_branch
          %437 = sbr.rel (%p435) target = $region60
        $region59: #{tpu_custom_call.1} parent=55 // pred_region
          %s438 = sand.u32 %s168, 1
          %s439 = scalar_lea.sflag [#allocation4], %s438
          %s440 = sand.u32 %s168, 1
          %s441 = smul.addr %s440, 8
          %s442 = scalar_lea.vmem [#allocation7], %s441
          %443 = dma.done %s439, 128
        $region60: #{tpu_custom_call.1} parent=55 // pred_fallthru
          _
      $region56: #{tpu_custom_call.1} parent=5 // pred_fallthru
        _
    $region6: #{tpu_custom_call.1} parent=1 // loop_footer
      %s22 = sadd.s32 1, %s18
    $region7: #{tpu_custom_call.1} parent=1 // loop_footer_branch
      %17 = sbr.rel target = $region3
    $region8: #{tpu_custom_call.1} parent=1 // loop_exit
      _
    %444 = vsyncpa [#allocation3], 1
    %s445 = scalar_lea.sflag [#allocation3], 1
    %446 = vsyncpa %s445, 1
    %447 = vsyncpa [#allocation6], 1
    %448 = vsyncpa [#allocation4], 1
    %s449 = scalar_lea.sflag [#allocation4], 1
    %450 = vsyncpa %s449, 1

</llo_original>
